<compile_context>
chip_gen: v6e
topology: v6e:2x2x1
jax: 0.10.0
libtpu: 0.0.40
codegen_flags: <defaults>
</compile_context>

<pallas_src>
import jax
import jax.numpy as jnp
from jax.experimental import pallas as pl
from jax.experimental.pallas import tpu as pltpu


# ----------------------------- helpers ---------------------------------------

def _device_vmem_bytes(default=64 << 20):
    """Physical VMEM of the current TPU generation (fallback: 64 MiB)."""
    try:
        info = pltpu.get_tpu_info()
        return int(getattr(info, "vmem_capacity_bytes", default))
    except Exception:
        return default


def _vmem_limit(working_set_bytes, vmem_cap_bytes):
    """Scoped-VMEM hint: 2x the estimated per-step working set, clamped."""
    want = max(2 * int(working_set_bytes), 32 << 20)
    return int(min(want, (vmem_cap_bytes * 3) // 4))


# ----------------------------- forward ----------------------------------------

def nac_film_forward(wav, params, *, hop):
    B, C, L = wav.shape
    assert C == 1 and L % hop == 0
    T = L // hop
    dim = params["w_enc"].shape[1]
    K = params["codebook"].shape[0]

    # Generation-aware tile budget (v7x has 64 MiB VMEM vs 128 MiB on v5e/v6e).
    vmem_cap = _device_vmem_bytes()
    cap = 512 if vmem_cap >= (100 << 20) else 256            # 128-aligned caps
    if T <= cap:
        t_tile, T_pad = T, T                                 # single full-extent tile
    else:
        t_tile = cap                                         # multiple of 128
        T_pad = pl.cdiv(T, t_tile) * t_tile
    nT = T_pad // t_tile
    needs_mask = T_pad != T

    # One-time param prep (hoisted out of the kernels / grid loop).
    cb_bf = params["codebook"].astype(jnp.bfloat16)          # MXU operand
    cb_f32 = cb_bf.astype(jnp.float32)                       # norms consistent w/ bf16 dot
    c_norms = jnp.sum(cb_f32 * cb_f32, axis=-1)[None, :]     # (1, K) f32
    w_enc_bf = params["w_enc"].astype(jnp.bfloat16)          # (hop, dim)
    w_dec_t_bf = params["w_dec"].T.astype(jnp.bfloat16)      # (hop, dim)
    b_dec_t = params["b_dec"].T                              # (hop, 1) f32

    patches = wav.reshape(B, T, hop)
    if needs_mask:
        patches = jnp.pad(patches, ((0, 0), (0, T_pad - T), (0, 0)))

    # --- pass 1: encoder + time-sum + VQ encode (codes out) -------------------
    def enc_vq_kernel(x_ref, we_ref, be_ref, cb_ref, cn_ref, codes_ref, sum_ref):
        # strided Conv1d == patch matmul; bf16 MXU operands, f32 accumulation.
        emb = jnp.dot(x_ref[...].astype(jnp.bfloat16), we_ref[...],
                      preferred_element_type=jnp.float32) + be_ref[...]

        # per-batch time-sum: resident output block, init on first time tile.
        @pl.when(pl.program_id(1) == 0)
        def _():
            sum_ref[...] = jnp.zeros_like(sum_ref)
        if needs_mask:
            row = jax.lax.broadcasted_iota(jnp.int32, emb.shape, 0)
            valid = (pl.program_id(1) * t_tile + row) < T
            sum_ref[...] += jnp.sum(jnp.where(valid, emb, 0.0),
                                    axis=0, keepdims=True)
        else:
            sum_ref[...] += jnp.sum(emb, axis=0, keepdims=True)

        # VQ encode: argmin_k ||e - c_k||^2 (||e||^2 constant per row -> drop).
        # Score matmul operands bf16; accumulation + argmin/tie-break in f32.
        cb = cb_ref[...]                                     # (K, dim) bf16
        scores = (-2.0 * jax.lax.dot_general(
                      emb.astype(jnp.bfloat16), cb,
                      (((1,), (1,)), ((), ())),
                      preferred_element_type=jnp.float32)
                  + cn_ref[...])                             # (t_tile, K) f32
        kio = jax.lax.broadcasted_iota(jnp.int32, scores.shape, 1)
        min_s = jnp.min(scores, axis=-1, keepdims=True)
        codes_ref[...] = jnp.min(jnp.where(scores == min_s, kio, cb.shape[0]),
                                 axis=-1, keepdims=True)     # lowest-index tie-break

    est1 = (4 * t_tile * (hop + 2 * dim + 2 * K + 2)
            + 2 * (hop * dim + K * dim) + 4 * (2 * dim + K))
    codes, time_sum = pl.pallas_call(
        enc_vq_kernel,
        out_shape=(jax.ShapeDtypeStruct((B, T_pad, 1), jnp.int32),
                   jax.ShapeDtypeStruct((B, 1, dim), jnp.float32)),
        grid=(B, nT),
        in_specs=[
            pl.BlockSpec((None, t_tile, hop), lambda b, t: (b, t, 0)),
            pl.BlockSpec((hop, dim), lambda b, t: (0, 0)),
            pl.BlockSpec((1, dim), lambda b, t: (0, 0)),
            pl.BlockSpec((K, dim), lambda b, t: (0, 0)),
            pl.BlockSpec((1, K), lambda b, t: (0, 0)),
        ],
        out_specs=(
            pl.BlockSpec((None, t_tile, 1), lambda b, t: (b, t, 0)),
            pl.BlockSpec((None, 1, dim), lambda b, t: (b, 0, 0)),
        ),
        compiler_params=pltpu.CompilerParams(
            dimension_semantics=("parallel", "arbitrary"),
            vmem_limit_bytes=_vmem_limit(est1, vmem_cap)),
    )(patches, w_enc_bf, params["b_enc"], cb_bf, c_norms)
    # TODO(synk): for v7x small-batch inference (B<=2), split the time reduction
    # over a leading parallel grid axis (two partial sums, combined below) so
    # both TensorCores stay busy during pass 1.

    # --- conditioning in XLA: mean(pre-quant emb) -> Linear -> FiLM gamma/beta -
    time_avg = time_sum[:, 0, :] * (1.0 / T)                 # (B, dim) f32
    h = time_avg @ params["w_lin"] + params["b_lin"]
    gamma3 = (h @ params["w_gamma"] + params["b_gamma"]).reshape(B, 1, dim)
    beta3 = (h @ params["w_beta"] + params["b_beta"]).reshape(B, 1, dim)

    # --- pass 2: VQ decode + FiLM + decoder matmul (fused) ---------------------
    def film_dec_kernel(c_ref, g_ref, b_ref, cb_ref, wdt_ref, bd_ref, o_ref):
        cb = cb_ref[...]                                     # (K, dim) bf16
        codes_col = c_ref[...]                               # (t_tile, 1) int32
        kio = jax.lax.broadcasted_iota(
            jnp.int32, (codes_col.shape[0], cb.shape[0]), 1)
        onehot = (kio == codes_col).astype(jnp.bfloat16)     # (t_tile, K)
        # VQ decode: one-hot MXU lookup against the resident codebook.
        emb_r = jnp.dot(onehot, cb, preferred_element_type=jnp.float32)
        mod = g_ref[...] * emb_r + b_ref[...]                # FiLM, f32 elementwise
        # ConvTranspose1d(dim->1, k=hop, s=hop) == per-frame matmul; (hop, t_tile)
        # orientation keeps the output block lane-dense on the time axis.
        p = jax.lax.dot_general(wdt_ref[...], mod.astype(jnp.bfloat16),
                                (((1,), (1,)), ((), ())),
                                preferred_element_type=jnp.float32)
        o_ref[...] = p + bd_ref[...]

    est2 = (4 * t_tile * (2 * dim + K + hop + 2)
            + 2 * (K * dim + hop * dim) + 4 * (2 * dim + hop))
    out_t = pl.pallas_call(
        film_dec_kernel,
        out_shape=jax.ShapeDtypeStruct((B, hop, T_pad), jnp.float32),
        grid=(B, nT),
        in_specs=[
            pl.BlockSpec((None, t_tile, 1), lambda b, t: (b, t, 0)),
            pl.BlockSpec((None, 1, dim), lambda b, t: (b, 0, 0)),
            pl.BlockSpec((None, 1, dim), lambda b, t: (b, 0, 0)),
            pl.BlockSpec((K, dim), lambda b, t: (0, 0)),
            pl.BlockSpec((hop, dim), lambda b, t: (0, 0)),
            pl.BlockSpec((hop, 1), lambda b, t: (0, 0)),
        ],
        out_specs=pl.BlockSpec((None, hop, t_tile), lambda b, t: (b, 0, t)),
        compiler_params=pltpu.CompilerParams(
            dimension_semantics=("parallel", "parallel"),
            vmem_limit_bytes=_vmem_limit(est2, vmem_cap)),
    )(codes, gamma3, beta3, cb_bf, w_dec_t_bf, b_dec_t)
    # TODO(synk): when production hop is a multiple of 128, emit pass 2 directly
    # in (B, T, hop) layout and drop the transpose below (saves one output-sized
    # HBM round trip).
    # TODO(synk): on v7x, single-buffer the constant-index operands (codebook /
    # weights) via pipeline_mode=pl.Buffered(1) or a scratch preload to free
    # VMEM for a larger time tile.

    # Layout plumbing back to PyTorch's (B, 1, L): out[b, 0, t*hop + h].
    out = jnp.transpose(out_t, (0, 2, 1)).reshape(B, 1, T_pad * hop)
    return out[:, :, :L] if needs_mask else out


# ----------------------------- main -------------------------------------------

if __name__ == "__main__":
    B, L, hop, dim, K = 2, 128, 8, 32, 64

    key = jax.random.PRNGKey(0)
    ks = jax.random.split(key, 12)
    wav = jax.random.normal(ks[0], (B, 1, L), jnp.float32)

    params = {
        "w_enc":    jax.random.normal(ks[1], (hop, dim), jnp.float32) * 0.1,
        "b_enc":    jax.random.normal(ks[2], (1, dim), jnp.float32) * 0.1,
        "codebook": jax.random.normal(ks[3], (K, dim), jnp.float32),
        "w_lin":    jax.random.normal(ks[4], (dim, dim), jnp.float32) * 0.1,
        "b_lin":    jax.random.normal(ks[5], (1, dim), jnp.float32) * 0.1,
        "w_gamma":  jax.random.normal(ks[6], (dim, dim), jnp.float32) * 0.1,
        "b_gamma":  jnp.ones((1, dim), jnp.float32),   # gamma biased toward 1
        "w_beta":   jax.random.normal(ks[7], (dim, dim), jnp.float32) * 0.1,
        "b_beta":   jnp.zeros((1, dim), jnp.float32),
        "w_dec":    jax.random.normal(ks[8], (dim, hop), jnp.float32) * 0.1,
        "b_dec":    jax.random.normal(ks[9], (1, hop), jnp.float32) * 0.01,
    }

    fwd = jax.jit(lambda w: nac_film_forward(w, params, hop=hop))
    out = fwd(wav)
    jax.block_until_ready(out)
    assert out.shape == (B, 1, L) and out.dtype == jnp.float32
    print("KERNEL_OK")
</pallas_src>

<mosaic_0001>
module attributes {stable_mosaic.version = 11 : i64} {
  func.func @enc_vq_kernel(%arg0: i32, %arg1: i32, %arg2: memref<1x16x8xf32, #tpu.memory_space<vmem>>, %arg3: memref<8x32xbf16, #tpu.memory_space<vmem>>, %arg4: memref<1x32xf32, #tpu.memory_space<vmem>>, %arg5: memref<64x32xbf16, #tpu.memory_space<vmem>>, %arg6: memref<1x64xf32, #tpu.memory_space<vmem>>, %arg7: memref<1x16x1xi32, #tpu.memory_space<vmem>>, %arg8: memref<1x1x32xf32, #tpu.memory_space<vmem>>) attributes {dimension_semantics = [#tpu.dimension_semantics<parallel>, #tpu.dimension_semantics<arbitrary>], iteration_bounds = array<i64: 2, 1>, scalar_prefetch = 0 : i64, scratch_operands = 0 : i64, tpu.core_type = #tpu.core_type<tc>, window_params = [{transform_indices = @transform_0, window_bounds = array<i64: 1, 16, 8>}, {pipeline_mode = #tpu.pipeline_mode<synchronous>, transform_indices = @transform_1, window_bounds = array<i64: 8, 32>}, {pipeline_mode = #tpu.pipeline_mode<synchronous>, transform_indices = @transform_2, window_bounds = array<i64: 1, 32>}, {pipeline_mode = #tpu.pipeline_mode<synchronous>, transform_indices = @transform_3, window_bounds = array<i64: 64, 32>}, {pipeline_mode = #tpu.pipeline_mode<synchronous>, transform_indices = @transform_4, window_bounds = array<i64: 1, 64>}, {transform_indices = @transform_5, window_bounds = array<i64: 1, 16, 1>}, {transform_indices = @transform_6, window_bounds = array<i64: 1, 1, 32>}]} {
    %c0 = arith.constant 0 : index
    %c0_0 = arith.constant 0 : index
    %c0_1 = arith.constant 0 : index
    %0 = vector.load %arg2[%c0, %c0_0, %c0_1] : memref<1x16x8xf32, #tpu.memory_space<vmem>>, vector<1x16x8xf32>
    %1 = vector.shape_cast %0 : vector<1x16x8xf32> to vector<16x8xf32>
    %2 = arith.truncf %1 : vector<16x8xf32> to vector<16x8xbf16>
    %c0_2 = arith.constant 0 : index
    %c0_3 = arith.constant 0 : index
    %3 = vector.load %arg3[%c0_2, %c0_3] : memref<8x32xbf16, #tpu.memory_space<vmem>>, vector<8x32xbf16>
    %cst = arith.constant dense<0.000000e+00> : vector<16x32xf32>
    %4 = tpu.matmul %2, %3, %cst {dimension_numbers = #tpu.dot_dimension_numbers<[1], [0], [0], [1], [0, 0, 1, 1], [], []>} : vector<16x8xbf16>, vector<8x32xbf16>, vector<16x32xf32> -> vector<16x32xf32>
    %c0_4 = arith.constant 0 : index
    %c0_5 = arith.constant 0 : index
    %5 = vector.load %arg4[%c0_4, %c0_5] : memref<1x32xf32, #tpu.memory_space<vmem>>, vector<1x32xf32>
    %6 = vector.broadcast %5 : vector<1x32xf32> to vector<16x32xf32>
    %7 = arith.addf %4, %6 : vector<16x32xf32>
    %c0_i32 = arith.constant 0 : i32
    %8 = arith.cmpi eq, %arg1, %c0_i32 : i32
    %9 = arith.extui %8 : i1 to i32
    %c0_i32_6 = arith.constant 0 : i32
    %10 = arith.cmpi ne, %9, %c0_i32_6 : i32
    scf.if %10 {
      %cst_25 = arith.constant 0.000000e+00 : f32
      %39 = vector.broadcast %cst_25 : f32 to vector<1x32xf32>
      %c0_26 = arith.constant 0 : index
      %c0_27 = arith.constant 0 : index
      %c0_28 = arith.constant 0 : index
      %40 = vector.load %arg8[%c0_26, %c0_27, %c0_28] : memref<1x1x32xf32, #tpu.memory_space<vmem>>, vector<1x1x32xf32>
      %41 = vector.shape_cast %40 : vector<1x1x32xf32> to vector<1x32xf32>
      %42 = vector.shape_cast %39 : vector<1x32xf32> to vector<1x1x32xf32>
      tpu.vector_store %arg8[%c0_26, %c0_27, %c0_28], %42 {strides = array<i32>} : memref<1x1x32xf32, #tpu.memory_space<vmem>>, vector<1x1x32xf32>,
    } else {
    }
    %c0_7 = arith.constant 0 : index
    %c0_8 = arith.constant 0 : index
    %c0_9 = arith.constant 0 : index
    %11 = vector.load %arg8[%c0_7, %c0_8, %c0_9] : memref<1x1x32xf32, #tpu.memory_space<vmem>>, vector<1x1x32xf32>
    %12 = vector.shape_cast %11 : vector<1x1x32xf32> to vector<1x32xf32>
    %cst_10 = arith.constant dense<0.000000e+00> : vector<32xf32>
    %13 = vector.multi_reduction <add>, %7, %cst_10 [0] : vector<16x32xf32> to vector<32xf32>
    %14 = vector.shape_cast %13 : vector<32xf32> to vector<1x32xf32>
    %15 = arith.addf %12, %14 : vector<1x32xf32>
    %c0_11 = arith.constant 0 : index
    %c0_12 = arith.constant 0 : index
    %c0_13 = arith.constant 0 : index
    %16 = vector.load %arg8[%c0_11, %c0_12, %c0_13] : memref<1x1x32xf32, #tpu.memory_space<vmem>>, vector<1x1x32xf32>
    %17 = vector.shape_cast %16 : vector<1x1x32xf32> to vector<1x32xf32>
    %18 = vector.shape_cast %15 : vector<1x32xf32> to vector<1x1x32xf32>
    tpu.vector_store %arg8[%c0_11, %c0_12, %c0_13], %18 {strides = array<i32>} : memref<1x1x32xf32, #tpu.memory_space<vmem>>, vector<1x1x32xf32>,
    %c0_14 = arith.constant 0 : index
    %c0_15 = arith.constant 0 : index
    %19 = vector.load %arg5[%c0_14, %c0_15] : memref<64x32xbf16, #tpu.memory_space<vmem>>, vector<64x32xbf16>
    %20 = arith.truncf %7 : vector<16x32xf32> to vector<16x32xbf16>
    %cst_16 = arith.constant dense<0.000000e+00> : vector<16x64xf32>
    %21 = tpu.matmul %20, %19, %cst_16 {dimension_numbers = #tpu.dot_dimension_numbers<[1], [1], [0], [0], [0, 0, 1, 0], [], []>} : vector<16x32xbf16>, vector<64x32xbf16>, vector<16x64xf32> -> vector<16x64xf32>
    %cst_17 = arith.constant -2.000000e+00 : f32
    %22 = vector.broadcast %cst_17 : f32 to vector<16x64xf32>
    %23 = arith.mulf %22, %21 : vector<16x64xf32>
    %c0_18 = arith.constant 0 : index
    %c0_19 = arith.constant 0 : index
    %24 = vector.load %arg6[%c0_18, %c0_19] : memref<1x64xf32, #tpu.memory_space<vmem>>, vector<1x64xf32>
    %25 = vector.broadcast %24 : vector<1x64xf32> to vector<16x64xf32>
    %26 = arith.addf %23, %25 : vector<16x64xf32>
    %27 = tpu.iota {dimensions = array<i32: 1>} : vector<16x64xi32>
    %cst_20 = arith.constant dense<0x7F800000> : vector<16xf32>
    %28 = vector.multi_reduction <minimumf>, %26, %cst_20 [1] : vector<16x64xf32> to vector<16xf32>
    %29 = vector.shape_cast %28 : vector<16xf32> to vector<16x1xf32>
    %30 = vector.broadcast %29 : vector<16x1xf32> to vector<16x64xf32>
    %31 = arith.cmpf oeq, %26, %30 : vector<16x64xf32>
    %c64_i32 = arith.constant 64 : i32
    %32 = vector.broadcast %c64_i32 : i32 to vector<16x64xi32>
    %33 = arith.select %31, %27, %32 : vector<16x64xi1>, vector<16x64xi32>
    %cst_21 = arith.constant dense<2147483647> : vector<16xi32>
    %34 = vector.multi_reduction <minsi>, %33, %cst_21 [1] : vector<16x64xi32> to vector<16xi32>
    %35 = vector.shape_cast %34 : vector<16xi32> to vector<16x1xi32>
    %c0_22 = arith.constant 0 : index
    %c0_23 = arith.constant 0 : index
    %c0_24 = arith.constant 0 : index
    %36 = vector.load %arg7[%c0_22, %c0_23, %c0_24] : memref<1x16x1xi32, #tpu.memory_space<vmem>>, vector<1x16x1xi32>
    %37 = vector.shape_cast %36 : vector<1x16x1xi32> to vector<16x1xi32>
    %38 = vector.shape_cast %35 : vector<16x1xi32> to vector<1x16x1xi32>
    tpu.vector_store %arg7[%c0_22, %c0_23, %c0_24], %38 {strides = array<i32>} : memref<1x16x1xi32, #tpu.memory_space<vmem>>, vector<1x16x1xi32>,
    return
  }
  func.func @transform_0(%arg0: i32, %arg1: i32) -> (i32, i32, i32) {
    %c0_i32 = arith.constant 0 : i32
    %c0_i32_0 = arith.constant 0 : i32
    return %arg0, %arg1, %c0_i32 : i32, i32, i32
  }
  func.func @transform_1(%arg0: i32, %arg1: i32) -> (i32, i32) {
    %c0_i32 = arith.constant 0 : i32
    %c0_i32_0 = arith.constant 0 : i32
    %c0_i32_1 = arith.constant 0 : i32
    return %c0_i32, %c0_i32_0 : i32, i32
  }
  func.func @transform_2(%arg0: i32, %arg1: i32) -> (i32, i32) {
    %c0_i32 = arith.constant 0 : i32
    %c0_i32_0 = arith.constant 0 : i32
    %c0_i32_1 = arith.constant 0 : i32
    return %c0_i32, %c0_i32_0 : i32, i32
  }
  func.func @transform_3(%arg0: i32, %arg1: i32) -> (i32, i32) {
    %c0_i32 = arith.constant 0 : i32
    %c0_i32_0 = arith.constant 0 : i32
    %c0_i32_1 = arith.constant 0 : i32
    return %c0_i32, %c0_i32_0 : i32, i32
  }
  func.func @transform_4(%arg0: i32, %arg1: i32) -> (i32, i32) {
    %c0_i32 = arith.constant 0 : i32
    %c0_i32_0 = arith.constant 0 : i32
    %c0_i32_1 = arith.constant 0 : i32
    return %c0_i32, %c0_i32_0 : i32, i32
  }
  func.func @transform_5(%arg0: i32, %arg1: i32) -> (i32, i32, i32) {
    %c0_i32 = arith.constant 0 : i32
    %c0_i32_0 = arith.constant 0 : i32
    return %arg0, %arg1, %c0_i32 : i32, i32, i32
  }
  func.func @transform_6(%arg0: i32, %arg1: i32) -> (i32, i32, i32) {
    %c0_i32 = arith.constant 0 : i32
    %c0_i32_0 = arith.constant 0 : i32
    %c0_i32_1 = arith.constant 0 : i32
    return %arg0, %c0_i32, %c0_i32_0 : i32, i32, i32
  }
}

module attributes {stable_mosaic.version = 11 : i64} {
  func.func @film_dec_kernel(%arg0: i32, %arg1: i32, %arg2: memref<1x16x1xi32, #tpu.memory_space<vmem>>, %arg3: memref<1x1x32xf32, #tpu.memory_space<vmem>>, %arg4: memref<1x1x32xf32, #tpu.memory_space<vmem>>, %arg5: memref<64x32xbf16, #tpu.memory_space<vmem>>, %arg6: memref<8x32xbf16, #tpu.memory_space<vmem>>, %arg7: memref<8x1xf32, #tpu.memory_space<vmem>>, %arg8: memref<1x8x16xf32, #tpu.memory_space<vmem>>) attributes {dimension_semantics = [#tpu.dimension_semantics<parallel>, #tpu.dimension_semantics<parallel>], iteration_bounds = array<i64: 2, 1>, scalar_prefetch = 0 : i64, scratch_operands = 0 : i64, tpu.core_type = #tpu.core_type<tc>, window_params = [{transform_indices = @transform_0, window_bounds = array<i64: 1, 16, 1>}, {transform_indices = @transform_1, window_bounds = array<i64: 1, 1, 32>}, {transform_indices = @transform_2, window_bounds = array<i64: 1, 1, 32>}, {pipeline_mode = #tpu.pipeline_mode<synchronous>, transform_indices = @transform_3, window_bounds = array<i64: 64, 32>}, {pipeline_mode = #tpu.pipeline_mode<synchronous>, transform_indices = @transform_4, window_bounds = array<i64: 8, 32>}, {pipeline_mode = #tpu.pipeline_mode<synchronous>, transform_indices = @transform_5, window_bounds = array<i64: 8, 1>}, {transform_indices = @transform_6, window_bounds = array<i64: 1, 8, 16>}]} {
    %c0 = arith.constant 0 : index
    %c0_0 = arith.constant 0 : index
    %0 = vector.load %arg5[%c0, %c0_0] : memref<64x32xbf16, #tpu.memory_space<vmem>>, vector<64x32xbf16>
    %c0_1 = arith.constant 0 : index
    %c0_2 = arith.constant 0 : index
    %c0_3 = arith.constant 0 : index
    %1 = vector.load %arg2[%c0_1, %c0_2, %c0_3] : memref<1x16x1xi32, #tpu.memory_space<vmem>>, vector<1x16x1xi32>
    %2 = vector.shape_cast %1 : vector<1x16x1xi32> to vector<16x1xi32>
    %3 = tpu.iota {dimensions = array<i32: 1>} : vector<16x64xi32>
    %4 = vector.broadcast %2 : vector<16x1xi32> to vector<16x64xi32>
    %5 = arith.cmpi eq, %3, %4 : vector<16x64xi32>
    %6 = arith.extui %5 : vector<16x64xi1> to vector<16x64xi32>
    %7 = arith.sitofp %6 : vector<16x64xi32> to vector<16x64xf32>
    %8 = arith.truncf %7 : vector<16x64xf32> to vector<16x64xbf16>
    %cst = arith.constant dense<0.000000e+00> : vector<16x32xf32>
    %9 = tpu.matmul %8, %0, %cst {dimension_numbers = #tpu.dot_dimension_numbers<[1], [0], [0], [1], [0, 0, 1, 1], [], []>} : vector<16x64xbf16>, vector<64x32xbf16>, vector<16x32xf32> -> vector<16x32xf32>
    %c0_4 = arith.constant 0 : index
    %c0_5 = arith.constant 0 : index
    %c0_6 = arith.constant 0 : index
    %10 = vector.load %arg3[%c0_4, %c0_5, %c0_6] : memref<1x1x32xf32, #tpu.memory_space<vmem>>, vector<1x1x32xf32>
    %11 = vector.shape_cast %10 : vector<1x1x32xf32> to vector<1x32xf32>
    %12 = vector.broadcast %11 : vector<1x32xf32> to vector<16x32xf32>
    %13 = arith.mulf %12, %9 : vector<16x32xf32>
    %c0_7 = arith.constant 0 : index
    %c0_8 = arith.constant 0 : index
    %c0_9 = arith.constant 0 : index
    %14 = vector.load %arg4[%c0_7, %c0_8, %c0_9] : memref<1x1x32xf32, #tpu.memory_space<vmem>>, vector<1x1x32xf32>
    %15 = vector.shape_cast %14 : vector<1x1x32xf32> to vector<1x32xf32>
    %16 = vector.broadcast %15 : vector<1x32xf32> to vector<16x32xf32>
    %17 = arith.addf %13, %16 : vector<16x32xf32>
    %c0_10 = arith.constant 0 : index
    %c0_11 = arith.constant 0 : index
    %18 = vector.load %arg6[%c0_10, %c0_11] : memref<8x32xbf16, #tpu.memory_space<vmem>>, vector<8x32xbf16>
    %19 = arith.truncf %17 : vector<16x32xf32> to vector<16x32xbf16>
    %cst_12 = arith.constant dense<0.000000e+00> : vector<8x16xf32>
    %20 = tpu.matmul %18, %19, %cst_12 {dimension_numbers = #tpu.dot_dimension_numbers<[1], [1], [0], [0], [0, 0, 1, 0], [], []>} : vector<8x32xbf16>, vector<16x32xbf16>, vector<8x16xf32> -> vector<8x16xf32>
    %c0_13 = arith.constant 0 : index
    %c0_14 = arith.constant 0 : index
    %21 = vector.load %arg7[%c0_13, %c0_14] : memref<8x1xf32, #tpu.memory_space<vmem>>, vector<8x1xf32>
    %22 = vector.broadcast %21 : vector<8x1xf32> to vector<8x16xf32>
    %23 = arith.addf %20, %22 : vector<8x16xf32>
    %c0_15 = arith.constant 0 : index
    %c0_16 = arith.constant 0 : index
    %c0_17 = arith.constant 0 : index
    %24 = vector.load %arg8[%c0_15, %c0_16, %c0_17] : memref<1x8x16xf32, #tpu.memory_space<vmem>>, vector<1x8x16xf32>
    %25 = vector.shape_cast %24 : vector<1x8x16xf32> to vector<8x16xf32>
    %26 = vector.shape_cast %23 : vector<8x16xf32> to vector<1x8x16xf32>
    tpu.vector_store %arg8[%c0_15, %c0_16, %c0_17], %26 {strides = array<i32>} : memref<1x8x16xf32, #tpu.memory_space<vmem>>, vector<1x8x16xf32>,
    return
  }
  func.func @transform_0(%arg0: i32, %arg1: i32) -> (i32, i32, i32) {
    %c0_i32 = arith.constant 0 : i32
    %c0_i32_0 = arith.constant 0 : i32
    return %arg0, %arg1, %c0_i32 : i32, i32, i32
  }
  func.func @transform_1(%arg0: i32, %arg1: i32) -> (i32, i32, i32) {
    %c0_i32 = arith.constant 0 : i32
    %c0_i32_0 = arith.constant 0 : i32
    %c0_i32_1 = arith.constant 0 : i32
    return %arg0, %c0_i32, %c0_i32_0 : i32, i32, i32
  }
  func.func @transform_2(%arg0: i32, %arg1: i32) -> (i32, i32, i32) {
    %c0_i32 = arith.constant 0 : i32
    %c0_i32_0 = arith.constant 0 : i32
    %c0_i32_1 = arith.constant 0 : i32
    return %arg0, %c0_i32, %c0_i32_0 : i32, i32, i32
  }
  func.func @transform_3(%arg0: i32, %arg1: i32) -> (i32, i32) {
    %c0_i32 = arith.constant 0 : i32
    %c0_i32_0 = arith.constant 0 : i32
    %c0_i32_1 = arith.constant 0 : i32
    return %c0_i32, %c0_i32_0 : i32, i32
  }
  func.func @transform_4(%arg0: i32, %arg1: i32) -> (i32, i32) {
    %c0_i32 = arith.constant 0 : i32
    %c0_i32_0 = arith.constant 0 : i32
    %c0_i32_1 = arith.constant 0 : i32
    return %c0_i32, %c0_i32_0 : i32, i32
  }
  func.func @transform_5(%arg0: i32, %arg1: i32) -> (i32, i32) {
    %c0_i32 = arith.constant 0 : i32
    %c0_i32_0 = arith.constant 0 : i32
    %c0_i32_1 = arith.constant 0 : i32
    return %c0_i32, %c0_i32_0 : i32, i32
  }
  func.func @transform_6(%arg0: i32, %arg1: i32) -> (i32, i32, i32) {
    %c0_i32 = arith.constant 0 : i32
    %c0_i32_0 = arith.constant 0 : i32
    return %arg0, %c0_i32, %arg1 : i32, i32, i32
  }
}

</mosaic_0001>

<llo_original>
// kernel: _lambda_.3
$region0: #{_lambda_.3}
  #allocation0 [shape = 'u32[]', space=smem, size = 0x4, offset = 0x4, fixed_abs, tag = 'smem constant byte address 0x4 - core index']
  #allocation1 [shape = 'u32[144,128]{1,0:T(1,128)}', space=vmem, size = 0x12000, scoped, tag = 'internal scratch']
  %s0 = inlined_call_operand.vmem [shape: s32[2,16,1], index: 0, kind: input, shape index: {}]
  %s1 = inlined_call_operand.vmem [shape: f32[2,1,32], index: 1, kind: input, shape index: {}]
  %s2 = inlined_call_operand.vmem [shape: f32[2,1,32], index: 2, kind: input, shape index: {}]
  %s3 = inlined_call_operand.vmem [shape: bf16[64,32], index: 3, kind: input, shape index: {}]
  %s4 = inlined_call_operand.vmem [shape: bf16[8,32], index: 4, kind: input, shape index: {}]
  %s5 = inlined_call_operand.vmem [shape: f32[8,1], index: 5, kind: input, shape index: {}]
  %s6 = inlined_call_operand.vmem [shape: f32[2,8,16], index: 6, kind: output, shape index: {}]
  %s7 = sld [smem:[#allocation0]]
  $region57: #{_lambda_.3} parent=0
    _
  %s9 = ssub.s32 1, %s7
  %s10 = scalar_select 0, %s9, %s7
  loop: start=0, step=1, limit=4
  $region2: #{_lambda_.3} parent=0 // loop_pre_header
    _
  $region3: #{_lambda_.3} parent=0 // loop_header
    %s12 = sphi 0, %s16
    %p13 = scmp.ge.s32.totalorder %s12, 4
    %s19 = sphi 0, %s31
    %s20 = sphi 0, %s27
    %s21 = sphi 0, %s19
    %s22 = sphi 0, %s20
    %s23 = sphi 0, %s21
    %s24 = sphi 0, %s22
    %s36 = sphi 0, %s38
    %s39 = sphi 0, %s36
    %s40 = sphi 0, %s39
    %s56 = sphi 0, %s40
    %s62 = sphi 0, %s64
    %s65 = sphi 0, %s62
    %s66 = sphi 0, %s65
    %s82 = sphi 0, %s66
    %s88 = sphi 0, %s90
    %s91 = sphi 0, %s88
    %s92 = sphi 0, %s91
    %s108 = sphi 0, %s92
    %s112 = sphi 0, %s112
    %s114 = sphi 0, %s112
    %s115 = sphi 0, %s114
    %s129 = sphi 0, %s115
    %s133 = sphi 0, %s133
    %s135 = sphi 0, %s133
    %s136 = sphi 0, %s135
    %s150 = sphi 0, %s136
    %s154 = sphi 0, %s154
    %s156 = sphi 0, %s154
    %s157 = sphi 0, %s156
    %s171 = sphi 0, %s157
    %s179 = sphi 0, %s181
    %s182 = sphi 0, %s179
    %s183 = sphi 0, %s182
    %s199 = sphi 0, %s183
  $region4: #{_lambda_.3} parent=0 // loop_header_branch
    %15 = sbr.rel (%p13) target = $region8
  $region5: #{_lambda_.3} parent=0 // loop_body
    %s17 = ssub.s32 %s12, 1
    %s18 = ssub.s32 %s12, 2
    %s25 = sadd.s32 1, %s20
    %p26 = scmp.ge.s32.totalorder %s25, 1
    %s27 = scalar_select %p26, 0, %s25
    %s28 = sadd.s32 1, %s19
    %s29 = scalar_select %p26, %s28, %s19
    %p30 = scmp.ge.s32.totalorder %s29, 2
    %s31 = scalar_select %p30, 0, %s29
    %s32 = ssub.s32 %s19, %s31
    %s33 = ssub.s32 %s20, %s27
    %s34 = sor.u32 %s32, %s33
    %p35 = scmp.eq.s32.totalorder %s34, 0
    %s37 = sadd.s32 %s36, 1
    %s38 = scalar_select %p35, %s36, %s37
    %p41 = pneg %p35
    %p42 = scmp.eq.s32.totalorder %s12, 1
    %p43 = por %p41, %p42
    %p44 = scmp.ne.s32.totalorder %s36, %s39
    %p45 = scmp.eq.s32.totalorder %s12, 0
    %p46 = por %p44, %p45
    %p47 = scmp.ne.s32.totalorder %s36, %s39
    %p48 = scmp.eq.s32.totalorder %s17, 1
    %p49 = por %p47, %p48
    %p50 = scmp.ne.s32.totalorder %s39, %s40
    %p51 = scmp.eq.s32.totalorder %s17, 0
    %p52 = por %p50, %p51
    %p53 = scmp.ne.s32.totalorder %s39, %s40
    %p54 = scmp.eq.s32.totalorder %s18, 1
    %p55 = por %p53, %p54
    %p57 = scmp.ne.s32.totalorder %s40, %s56
    %p58 = scmp.eq.s32.totalorder %s18, 0
    %p59 = por %p57, %p58
    %s60 = ssub.s32 %s19, %s31
    %p61 = scmp.eq.s32.totalorder %s60, 0
    %s63 = sadd.s32 %s62, 1
    %s64 = scalar_select %p61, %s62, %s63
    %p67 = pneg %p61
    %p68 = scmp.eq.s32.totalorder %s12, 1
    %p69 = por %p67, %p68
    %p70 = scmp.ne.s32.totalorder %s62, %s65
    %p71 = scmp.eq.s32.totalorder %s12, 0
    %p72 = por %p70, %p71
    %p73 = scmp.ne.s32.totalorder %s62, %s65
    %p74 = scmp.eq.s32.totalorder %s17, 1
    %p75 = por %p73, %p74
    %p76 = scmp.ne.s32.totalorder %s65, %s66
    %p77 = scmp.eq.s32.totalorder %s17, 0
    %p78 = por %p76, %p77
    %p79 = scmp.ne.s32.totalorder %s65, %s66
    %p80 = scmp.eq.s32.totalorder %s18, 1
    %p81 = por %p79, %p80
    %p83 = scmp.ne.s32.totalorder %s66, %s82
    %p84 = scmp.eq.s32.totalorder %s18, 0
    %p85 = por %p83, %p84
    %s86 = ssub.s32 %s19, %s31
    %p87 = scmp.eq.s32.totalorder %s86, 0
    %s89 = sadd.s32 %s88, 1
    %s90 = scalar_select %p87, %s88, %s89
    %p93 = pneg %p87
    %p94 = scmp.eq.s32.totalorder %s12, 1
    %p95 = por %p93, %p94
    %p96 = scmp.ne.s32.totalorder %s88, %s91
    %p97 = scmp.eq.s32.totalorder %s12, 0
    %p98 = por %p96, %p97
    %p99 = scmp.ne.s32.totalorder %s88, %s91
    %p100 = scmp.eq.s32.totalorder %s17, 1
    %p101 = por %p99, %p100
    %p102 = scmp.ne.s32.totalorder %s91, %s92
    %p103 = scmp.eq.s32.totalorder %s17, 0
    %p104 = por %p102, %p103
    %p105 = scmp.ne.s32.totalorder %s91, %s92
    %p106 = scmp.eq.s32.totalorder %s18, 1
    %p107 = por %p105, %p106
    %p109 = scmp.ne.s32.totalorder %s92, %s108
    %p110 = scmp.eq.s32.totalorder %s18, 0
    %p111 = por %p109, %p110
    %s113 = sadd.s32 %s112, 1
    %p116 = scmp.eq.s32.totalorder %s12, 1
    %p117 = scmp.ne.s32.totalorder %s112, %s114
    %p118 = scmp.eq.s32.totalorder %s12, 0
    %p119 = por %p117, %p118
    %p120 = scmp.ne.s32.totalorder %s112, %s114
    %p121 = scmp.eq.s32.totalorder %s17, 1
    %p122 = por %p120, %p121
    %p123 = scmp.ne.s32.totalorder %s114, %s115
    %p124 = scmp.eq.s32.totalorder %s17, 0
    %p125 = por %p123, %p124
    %p126 = scmp.ne.s32.totalorder %s114, %s115
    %p127 = scmp.eq.s32.totalorder %s18, 1
    %p128 = por %p126, %p127
    %p130 = scmp.ne.s32.totalorder %s115, %s129
    %p131 = scmp.eq.s32.totalorder %s18, 0
    %p132 = por %p130, %p131
    %s134 = sadd.s32 %s133, 1
    %p137 = scmp.eq.s32.totalorder %s12, 1
    %p138 = scmp.ne.s32.totalorder %s133, %s135
    %p139 = scmp.eq.s32.totalorder %s12, 0
    %p140 = por %p138, %p139
    %p141 = scmp.ne.s32.totalorder %s133, %s135
    %p142 = scmp.eq.s32.totalorder %s17, 1
    %p143 = por %p141, %p142
    %p144 = scmp.ne.s32.totalorder %s135, %s136
    %p145 = scmp.eq.s32.totalorder %s17, 0
    %p146 = por %p144, %p145
    %p147 = scmp.ne.s32.totalorder %s135, %s136
    %p148 = scmp.eq.s32.totalorder %s18, 1
    %p149 = por %p147, %p148
    %p151 = scmp.ne.s32.totalorder %s136, %s150
    %p152 = scmp.eq.s32.totalorder %s18, 0
    %p153 = por %p151, %p152
    %s155 = sadd.s32 %s154, 1
    %p158 = scmp.eq.s32.totalorder %s12, 1
    %p159 = scmp.ne.s32.totalorder %s154, %s156
    %p160 = scmp.eq.s32.totalorder %s12, 0
    %p161 = por %p159, %p160
    %p162 = scmp.ne.s32.totalorder %s154, %s156
    %p163 = scmp.eq.s32.totalorder %s17, 1
    %p164 = por %p162, %p163
    %p165 = scmp.ne.s32.totalorder %s156, %s157
    %p166 = scmp.eq.s32.totalorder %s17, 0
    %p167 = por %p165, %p166
    %p168 = scmp.ne.s32.totalorder %s156, %s157
    %p169 = scmp.eq.s32.totalorder %s18, 1
    %p170 = por %p168, %p169
    %p172 = scmp.ne.s32.totalorder %s157, %s171
    %p173 = scmp.eq.s32.totalorder %s18, 0
    %p174 = por %p172, %p173
    %s175 = ssub.s32 %s19, %s31
    %s176 = ssub.s32 %s20, %s27
    %s177 = sor.u32 %s175, %s176
    %p178 = scmp.eq.s32.totalorder %s177, 0
    %s180 = sadd.s32 %s179, 1
    %s181 = scalar_select %p178, %s179, %s180
    %p184 = pneg %p178
    %p185 = scmp.eq.s32.totalorder %s12, 1
    %p186 = por %p184, %p185
    %p187 = scmp.ne.s32.totalorder %s179, %s182
    %p188 = scmp.eq.s32.totalorder %s12, 0
    %p189 = por %p187, %p188
    %p190 = scmp.ne.s32.totalorder %s179, %s182
    %p191 = scmp.eq.s32.totalorder %s17, 1
    %p192 = por %p190, %p191
    %p193 = scmp.ne.s32.totalorder %s182, %s183
    %p194 = scmp.eq.s32.totalorder %s17, 0
    %p195 = por %p193, %p194
    %p196 = scmp.ne.s32.totalorder %s182, %s183
    %p197 = scmp.eq.s32.totalorder %s18, 1
    %p198 = por %p196, %p197
    %p200 = scmp.ne.s32.totalorder %s183, %s199
    %p201 = scmp.eq.s32.totalorder %s18, 0
    %p202 = por %p200, %p201
    %p203 = scmp.le.s32.totalorder 1, %s12
    %p204 = scmp.lt.s32.totalorder %s12, 3
    %p205 = pnand %p203, %p204
    %p206 = pneg %p205
    // Predicated region
    $region9: #{_lambda_.3} parent=5 // pred_check
      _
    $region10: #{_lambda_.3} parent=5 // pred_check_branch
      %208 = sbr.rel (%p205) target = $region12
    $region11: #{_lambda_.3} parent=5 // pred_region
      %s209 = ssub.s32 %s12, 1
      // Predicated region
      $region13: #{_lambda_.3} parent=11 // pred_check
        %p210 = pneg %p125
      $region14: #{_lambda_.3} parent=11 // pred_check_branch
        %212 = sbr.rel (%p210) target = $region16
      $region15: #{_lambda_.3} parent=11 // pred_region
        _
      $region16: #{_lambda_.3} parent=11 // pred_fallthru
        _
      // Predicated region
      $region17: #{_lambda_.3} parent=11 // pred_check
        %p213 = pneg %p146
      $region18: #{_lambda_.3} parent=11 // pred_check_branch
        %215 = sbr.rel (%p213) target = $region20
      $region19: #{_lambda_.3} parent=11 // pred_region
        _
      $region20: #{_lambda_.3} parent=11 // pred_fallthru
        _
      // Predicated region
      $region21: #{_lambda_.3} parent=11 // pred_check
        %p216 = pneg %p167
      $region22: #{_lambda_.3} parent=11 // pred_check_branch
        %218 = sbr.rel (%p216) target = $region24
      $region23: #{_lambda_.3} parent=11 // pred_region
        _
      $region24: #{_lambda_.3} parent=11 // pred_fallthru
        _
    $region12: #{_lambda_.3} parent=5 // pred_fallthru
      _
    %p219 = scmp.lt.s32.totalorder %s12, 2
    // Predicated region
    $region25: #{_lambda_.3} parent=5 // pred_check
      %p220 = pneg %p219
    $region26: #{_lambda_.3} parent=5 // pred_check_branch
      %222 = sbr.rel (%p220) target = $region28
    $region27: #{_lambda_.3} parent=5 // pred_region
      // Predicated region
      $region29: #{_lambda_.3} parent=27 // pred_check
        %p223 = pneg %p46
      $region30: #{_lambda_.3} parent=27 // pred_check_branch
        %225 = sbr.rel (%p223) target = $region32
      $region31: #{_lambda_.3} parent=27 // pred_region
        %s226 = smul.u32 2, %s20
        %p227 = scmp.lt.s32.totalorder %s19, 1
        %s228 = scalar_select %p227, %s19, 1
        %p229 = scmp.lt.s32.totalorder %s226, 1
        %s230 = scalar_select %p229, %s226, 1
        %s231 = smul.addr %s228, 2
        %s232 = sadd.s32 %s230, %s231
        %s233 = smul.addr %s232, 8
        %s234 = scalar_lea.vmem %s0, %s233
        %s235 = smul.u32 2, %s20
      $region32: #{_lambda_.3} parent=27 // pred_fallthru
        _
      // Predicated region
      $region33: #{_lambda_.3} parent=27 // pred_check
        %p236 = pneg %p72
      $region34: #{_lambda_.3} parent=27 // pred_check_branch
        %238 = sbr.rel (%p236) target = $region36
      $region35: #{_lambda_.3} parent=27 // pred_region
        %p239 = scmp.lt.s32.totalorder %s19, 1
        %s240 = scalar_select %p239, %s19, 1
        %s241 = scalar_lea.vmem %s1, %s240
      $region36: #{_lambda_.3} parent=27 // pred_fallthru
        _
      // Predicated region
      $region37: #{_lambda_.3} parent=27 // pred_check
        %p242 = pneg %p98
      $region38: #{_lambda_.3} parent=27 // pred_check_branch
        %244 = sbr.rel (%p242) target = $region40
      $region39: #{_lambda_.3} parent=27 // pred_region
        %p245 = scmp.lt.s32.totalorder %s19, 1
        %s246 = scalar_select %p245, %s19, 1
        %s247 = scalar_lea.vmem %s2, %s246
      $region40: #{_lambda_.3} parent=27 // pred_fallthru
        _
    $region28: #{_lambda_.3} parent=5 // pred_fallthru
      _
    %p248 = scmp.le.s32.totalorder 1, %s12
    %p249 = scmp.lt.s32.totalorder %s12, 3
    %p250 = pnand %p248, %p249
    %p251 = pneg %p250
    // Predicated region
    $region41: #{_lambda_.3} parent=5 // pred_check
      _
    $region42: #{_lambda_.3} parent=5 // pred_check_branch
      %253 = sbr.rel (%p250) target = $region44
    $region43: #{_lambda_.3} parent=5 // pred_region
      %s254 = ssub.s32 %s12, 1
      %s255 = smul.u32 2, %s22
      %p256 = scmp.lt.s32.totalorder %s21, 1
      %s257 = scalar_select %p256, %s21, 1
      %p258 = scmp.lt.s32.totalorder %s255, 1
      %s259 = scalar_select %p258, %s255, 1
      %s260 = smul.addr %s257, 2
      %s261 = sadd.s32 %s259, %s260
      %s262 = smul.addr %s261, 8
      %s263 = scalar_lea.vmem %s0, %s262
      %p264 = pneg %p52
      %p265 = pneg %p49
      %p266 = scmp.lt.s32.totalorder %s21, 1
      %s267 = scalar_select %p266, %s21, 1
      %s268 = scalar_lea.vmem %s1, %s267
      %p269 = pneg %p78
      %p270 = pneg %p75
      %p271 = scmp.lt.s32.totalorder %s21, 1
      %s272 = scalar_select %p271, %s21, 1
      %s273 = scalar_lea.vmem %s2, %s272
      %p274 = pneg %p104
      %p275 = pneg %p101
      %p276 = pneg %p125
      %p277 = pneg %p122
      %p278 = pneg %p146
      %p279 = pneg %p143
      %p280 = pneg %p167
      %p281 = pneg %p164
      %p282 = pneg %p195
      %p283 = pneg %p192
      %p284 = scmp.lt.s32.totalorder %s21, 1
      %s285 = scalar_select %p284, %s21, 1
      %p286 = scmp.lt.s32.totalorder %s22, 0
      %s287 = scalar_select %p286, %s22, 0
      %s288 = sadd.s32 %s287, %s285
      %s289 = smul.addr %s288, 8
      %s290 = scalar_lea.vmem %s6, %s289
      %s291 = smul.u32 2, %s22
      %p292 = scmp.lt.s32.totalorder %s21, 1
      %s293 = scalar_select %p292, %s21, 1
      %p294 = scmp.lt.s32.totalorder %s291, 1
      %s295 = scalar_select %p294, %s291, 1
      %s296 = smul.addr %s293, 2
      %s297 = sadd.s32 %s295, %s296
      %s298 = smul.addr %s297, 8
      %s299 = scalar_lea.vmem %s0, %s298
      %s300 = smul.u32 2, %s22
      %p301 = scmp.lt.s32.totalorder %s21, 1
      %s302 = scalar_select %p301, %s21, 1
      %s303 = scalar_lea.vmem %s1, %s302
      %p304 = scmp.lt.s32.totalorder %s21, 1
      %s305 = scalar_select %p304, %s21, 1
      %s306 = scalar_lea.vmem %s2, %s305
      %p307 = scmp.lt.s32.totalorder %s21, 1
      %s308 = scalar_select %p307, %s21, 1
      %p309 = scmp.lt.s32.totalorder %s22, 0
      %s310 = scalar_select %p309, %s22, 0
      %s311 = sadd.s32 %s310, %s308
      %s312 = smul.addr %s311, 8
      %s313 = scalar_lea.vmem %s6, %s312
      %v315 = vld [vmem:[%s3] sm:$0xf]
      %v316 = vld [vmem:[%s3 + $0x4] sm:$0xf]
      %v317 = vld [vmem:[%s3 + $0x8] sm:$0xf]
      %v318 = vld [vmem:[%s3 + $0xc] sm:$0xf]
      %v319 = vld [vmem:[%s3 + $0x10] sm:$0xf]
      %v320 = vld [vmem:[%s3 + $0x14] sm:$0xf]
      %v321 = vld [vmem:[%s3 + $0x18] sm:$0xf]
      %v322 = vld [vmem:[%s3 + $0x1c] sm:$0xf]
      %v323 = vld [vmem:[%s299] sm:$0xff]
      %v324 = vld [vmem:[%s299 + $0x8] sm:$0xff]
      %v325 = vlaneseq
      %v326 = vand.u32 %v325, 127
      %327 = vset.pattern.permute.xlu0 0
      %328 = vperm.xlu0 %327, %v323
      %v329 = vpop.permute.xlu0 %328
      %330 = vset.pattern.permute.xlu0 0
      %331 = vperm.xlu0 %330, %v324
      %v332 = vpop.permute.xlu0 %331
      %vm333 = vcmp.eq.s32.totalorder %v326, %v329
      %vm334 = vcmp.eq.s32.totalorder %v326, %v332
      %v335 = vsel %vm333, 1, 0
      %v336 = vsel %vm334, 1, 0
      %v337 = vcvt.s32.f32 %v335
      %v338 = vcvt.s32.f32 %v336
      %v339 = vpack.c.bf16 %v338, %v337
      %v348 = vunpack.c.l.b16 %v315
      %v349 = vunpack.c.l.b16 %v316
      %v350 = vunpack.c.l.b16 %v317
      %v351 = vunpack.c.l.b16 %v318
      %v352 = vunpack.c.l.b16 %v319
      %v353 = vunpack.c.l.b16 %v320
      %v354 = vunpack.c.l.b16 %v321
      %v355 = vunpack.c.l.b16 %v322
      %v356 = vpack.c.b16 %v349, %v348
      %v357 = vpack.c.b16 %v351, %v350
      %v358 = vpack.c.b16 %v353, %v352
      %v359 = vpack.c.b16 %v355, %v354
      %vm364 = vcmask 523264
      %v366 = vsel %vm364, %v339, 0
      %368 = vmatprep.subr.bf16.mxu0 0
      %369 = vmatpush1.bf16.msra.mxu0 0
      %370 = vmatprep.subr.bf16.mxu0 0
      %371 = vmatpush1.bf16.msra.mxu0 0
      %372 = vmatprep.subr.bf16.mxu0 0
      %373 = vmatpush1.bf16.msra.mxu0 0
      %374 = vmatprep.subr.bf16.mxu0 0
      %375 = vmatpush1.bf16.msra.mxu0 0
      %376 = vmatprep.subr.bf16.mxu0 0
      %377 = vmatpush1.bf16.msra.mxu0 %v359
      %378 = vmatprep.subr.bf16.mxu0 0
      %379 = vmatpush1.bf16.msra.mxu0 %v358
      %380 = vmatprep.subr.bf16.mxu0 0
      %381 = vmatpush1.bf16.msra.mxu0 %v357
      %382 = vmatprep.subr.bf16.mxu0 0
      %383 = vmatpush1.bf16.msra.mxu0 %v356
      %384 = vmatprep.subr.bf16.mxu0 0
      %385 = vmatpush2.bf16.msra.mxu0 0
      %386 = vmatprep.subr.bf16.mxu0 0
      %387 = vmatpush2.bf16.msra.mxu0 0
      %388 = vmatprep.subr.bf16.mxu0 0
      %389 = vmatpush2.bf16.msra.mxu0 0
      %390 = vmatprep.subr.bf16.mxu0 0
      %391 = vmatpush2.bf16.msra.mxu0 0
      %392 = vmatprep.subr.bf16.mxu0 0
      %393 = vmatpush2.bf16.msra.mxu0 0
      %394 = vmatprep.subr.bf16.mxu0 0
      %395 = vmatpush2.bf16.msra.mxu0 0
      %396 = vmatprep.subr.bf16.mxu0 0
      %397 = vmatpush2.bf16.msra.mxu0 0
      %398 = vmatprep.subr.bf16.mxu0 0
      %399 = vmatpush2.bf16.msra.mxu0 0
      %400 = vmatprep.mubr.bf16.mxu0 0
      %401 = vmatmul.mubr.bf16.gmra.mxu0 %v366
      %v402 = vpop.f32.mrf.mxu0
      %v403 = vadd.f32 0.0, %v402
      %v404 = vpop.f32.mrf.mxu0
      %v405 = vpop.f32.mrf.mxu0
      %v406 = vadd.f32 0.0, %v405
      %v407 = vpop.f32.mrf.mxu0
      %408 = vdwg.mxu0
      %v409 = vld [vmem:[%s303] sm:$0x1]
      %v411 = vlaneseq
      %v412 = vshrl.u32 %v411, 7
      %v413 = vsub.s32 0, %v412
      %v414 = vrot.slane %v409, %v413
      %v416 = vmul.f32 %v414, %v403
      %v417 = vmul.f32 %v414, %v406
      %v418 = vld [vmem:[%s306] sm:$0x1]
      %v420 = vlaneseq
      %v421 = vshrl.u32 %v420, 7
      %v422 = vsub.s32 0, %v421
      %v423 = vrot.slane %v418, %v422
      %v425 = vadd.f32 %v416, %v423
      %v426 = vadd.f32 %v417, %v423
      %v427 = vld [vmem:[%s4] sm:$0xf]
      %v428 = vpack.c.bf16 %v426, %v425
      %v429 = vld [vmem:[%s5] sm:$0xff]
      %431 = vset.pattern.permute.xlu0 0
      %432 = vperm.xlu0 %431, %v429
      %v433 = vpop.permute.xlu0 %432
      %vm435 = vcmask 261120
      %v437 = vsel %vm435, %v427, 0
      %v440 = vsel %vm435, %v428, 0
      %442 = vmatprep.subr.bf16.mxu0 0
      %443 = vmatpush1.bf16.xpose.msra.mxu0 0
      %444 = vmatprep.subr.bf16.mxu0 0
      %445 = vmatpush1.bf16.xpose.msra.mxu0 0
      %446 = vmatprep.subr.bf16.mxu0 0
      %447 = vmatpush1.bf16.xpose.msra.mxu0 0
      %448 = vmatprep.subr.bf16.mxu0 0
      %449 = vmatpush1.bf16.xpose.msra.mxu0 0
      %450 = vmatprep.subr.bf16.mxu0 0
      %451 = vmatpush1.bf16.xpose.msra.mxu0 0
      %452 = vmatprep.subr.bf16.mxu0 0
      %453 = vmatpush1.bf16.xpose.msra.mxu0 0
      %454 = vmatprep.subr.bf16.mxu0 0
      %455 = vmatpush1.bf16.xpose.msra.mxu0 0
      %456 = vmatprep.subr.bf16.mxu0 0
      %457 = vmatpush1.bf16.xpose.msra.mxu0 %v440
      %458 = vmatprep.subr.bf16.mxu0 0
      %459 = vmatpush2.bf16.xpose.msra.mxu0 0
      %460 = vmatprep.subr.bf16.mxu0 0
      %461 = vmatpush2.bf16.xpose.msra.mxu0 0
      %462 = vmatprep.subr.bf16.mxu0 0
      %463 = vmatpush2.bf16.xpose.msra.mxu0 0
      %464 = vmatprep.subr.bf16.mxu0 0
      %465 = vmatpush2.bf16.xpose.msra.mxu0 0
      %466 = vmatprep.subr.bf16.mxu0 0
      %467 = vmatpush2.bf16.xpose.msra.mxu0 0
      %468 = vmatprep.subr.bf16.mxu0 0
      %469 = vmatpush2.bf16.xpose.msra.mxu0 0
      %470 = vmatprep.subr.bf16.mxu0 0
      %471 = vmatpush2.bf16.xpose.msra.mxu0 0
      %472 = vmatprep.subr.bf16.mxu0 0
      %473 = vmatpush2.bf16.xpose.msra.mxu0 0
      %474 = vmatprep.mubr.bf16.mxu0 0
      %475 = vmatmul.mubr.bf16.gmra.mxu0 %v437
      %v476 = vpop.f32.mrf.mxu0
      %v477 = vadd.f32 %v433, %v476
      %v478 = vpop.f32.mrf.mxu0
      %v479 = vpop.f32.mrf.mxu0
      %v480 = vpop.f32.mrf.mxu0
      %481 = vdwg.mxu0
      %vm482 = vcmask 130048
      %483 = vst.msk [vmem:[%s313] sm:$0xff] %vm482, %v477
      %p484 = scmp.lt.s32.totalorder %s21, 1
      %s485 = scalar_select %p484, %s21, 1
      %p486 = scmp.lt.s32.totalorder %s22, 0
      %s487 = scalar_select %p486, %s22, 0
      %s488 = sadd.s32 %s487, %s485
      %s489 = smul.addr %s488, 8
      %s490 = scalar_lea.vmem %s6, %s489
      // Predicated region
      $region45: #{_lambda_.3} parent=43 // pred_check
        %p491 = pneg %p192
      $region46: #{_lambda_.3} parent=43 // pred_check_branch
        %493 = sbr.rel (%p491) target = $region48
      $region47: #{_lambda_.3} parent=43 // pred_region
        _
      $region48: #{_lambda_.3} parent=43 // pred_fallthru
        _
    $region44: #{_lambda_.3} parent=5 // pred_fallthru
      _
    %p494 = scmp.le.s32.totalorder 2, %s12
    // Predicated region
    $region49: #{_lambda_.3} parent=5 // pred_check
      %p495 = pneg %p494
    $region50: #{_lambda_.3} parent=5 // pred_check_branch
      %497 = sbr.rel (%p495) target = $region52
    $region51: #{_lambda_.3} parent=5 // pred_region
      %s498 = ssub.s32 %s12, 2
      // Predicated region
      $region53: #{_lambda_.3} parent=51 // pred_check
        %p499 = pneg %p198
      $region54: #{_lambda_.3} parent=51 // pred_check_branch
        %501 = sbr.rel (%p499) target = $region56
      $region55: #{_lambda_.3} parent=51 // pred_region
        %p502 = scmp.lt.s32.totalorder %s23, 1
        %s503 = scalar_select %p502, %s23, 1
        %p504 = scmp.lt.s32.totalorder %s24, 0
        %s505 = scalar_select %p504, %s24, 0
        %s506 = sadd.s32 %s505, %s503
        %s507 = smul.addr %s506, 8
        %s508 = scalar_lea.vmem %s6, %s507
      $region56: #{_lambda_.3} parent=51 // pred_fallthru
        _
    $region52: #{_lambda_.3} parent=5 // pred_fallthru
      _
  $region6: #{_lambda_.3} parent=0 // loop_footer
    %s16 = sadd.s32 1, %s12
  $region7: #{_lambda_.3} parent=0 // loop_footer_branch
    %11 = sbr.rel target = $region3
  $region8: #{_lambda_.3} parent=0 // loop_exit
    _

// kernel: _lambda_.2
$region0: #{_lambda_.2}
  #allocation0 [shape = 'u32[]', space=smem, size = 0x4, offset = 0x4, fixed_abs, tag = 'smem constant byte address 0x4 - core index']
  #allocation1 [shape = 'u32[144,128]{1,0:T(1,128)}', space=vmem, size = 0x12000, scoped, tag = 'internal scratch']
  %s0 = inlined_call_operand.vmem [shape: f32[2,16,8], index: 0, kind: input, shape index: {}]
  %s1 = inlined_call_operand.vmem [shape: bf16[8,32], index: 1, kind: input, shape index: {}]
  %s2 = inlined_call_operand.vmem [shape: f32[1,32], index: 2, kind: input, shape index: {}]
  %s3 = inlined_call_operand.vmem [shape: bf16[64,32], index: 3, kind: input, shape index: {}]
  %s4 = inlined_call_operand.vmem [shape: f32[1,64], index: 4, kind: input, shape index: {}]
  %s5 = inlined_call_operand.vmem [shape: s32[2,16,1], index: 5, kind: output, shape index: {0}]
  %s6 = inlined_call_operand.vmem [shape: f32[2,1,32], index: 6, kind: output, shape index: {1}]
  %7 = xla_tuple %s5, %s6
  %s8 = sld [smem:[#allocation0]]
  $region65: #{_lambda_.2} parent=0
    _
  %s10 = ssub.s32 1, %s8
  %s11 = scalar_select 0, %s10, %s8
  loop: start=0, step=1, limit=4
  $region2: #{_lambda_.2} parent=0 // loop_pre_header
    _
  $region3: #{_lambda_.2} parent=0 // loop_header
    %s13 = sphi 0, %s17
    %p14 = scmp.ge.s32.totalorder %s13, 4
    %s20 = sphi 0, %s32
    %s21 = sphi 0, %s28
    %s22 = sphi 0, %s20
    %s23 = sphi 0, %s21
    %s24 = sphi 0, %s22
    %s25 = sphi 0, %s23
    %s37 = sphi 0, %s39
    %s40 = sphi 0, %s37
    %s41 = sphi 0, %s40
    %s57 = sphi 0, %s41
    %s61 = sphi 0, %s61
    %s63 = sphi 0, %s61
    %s64 = sphi 0, %s63
    %s78 = sphi 0, %s64
    %s82 = sphi 0, %s82
    %s84 = sphi 0, %s82
    %s85 = sphi 0, %s84
    %s99 = sphi 0, %s85
    %s103 = sphi 0, %s103
    %s105 = sphi 0, %s103
    %s106 = sphi 0, %s105
    %s120 = sphi 0, %s106
    %s124 = sphi 0, %s124
    %s126 = sphi 0, %s124
    %s127 = sphi 0, %s126
    %s141 = sphi 0, %s127
    %s149 = sphi 0, %s151
    %s152 = sphi 0, %s149
    %s153 = sphi 0, %s152
    %s169 = sphi 0, %s153
    %s175 = sphi 0, %s177
    %s178 = sphi 0, %s175
    %s179 = sphi 0, %s178
    %s195 = sphi 0, %s179
  $region4: #{_lambda_.2} parent=0 // loop_header_branch
    %16 = sbr.rel (%p14) target = $region8
  $region5: #{_lambda_.2} parent=0 // loop_body
    %s18 = ssub.s32 %s13, 1
    %s19 = ssub.s32 %s13, 2
    %s26 = sadd.s32 1, %s21
    %p27 = scmp.ge.s32.totalorder %s26, 1
    %s28 = scalar_select %p27, 0, %s26
    %s29 = sadd.s32 1, %s20
    %s30 = scalar_select %p27, %s29, %s20
    %p31 = scmp.ge.s32.totalorder %s30, 2
    %s32 = scalar_select %p31, 0, %s30
    %s33 = ssub.s32 %s20, %s32
    %s34 = ssub.s32 %s21, %s28
    %s35 = sor.u32 %s33, %s34
    %p36 = scmp.eq.s32.totalorder %s35, 0
    %s38 = sadd.s32 %s37, 1
    %s39 = scalar_select %p36, %s37, %s38
    %p42 = pneg %p36
    %p43 = scmp.eq.s32.totalorder %s13, 1
    %p44 = por %p42, %p43
    %p45 = scmp.ne.s32.totalorder %s37, %s40
    %p46 = scmp.eq.s32.totalorder %s13, 0
    %p47 = por %p45, %p46
    %p48 = scmp.ne.s32.totalorder %s37, %s40
    %p49 = scmp.eq.s32.totalorder %s18, 1
    %p50 = por %p48, %p49
    %p51 = scmp.ne.s32.totalorder %s40, %s41
    %p52 = scmp.eq.s32.totalorder %s18, 0
    %p53 = por %p51, %p52
    %p54 = scmp.ne.s32.totalorder %s40, %s41
    %p55 = scmp.eq.s32.totalorder %s19, 1
    %p56 = por %p54, %p55
    %p58 = scmp.ne.s32.totalorder %s41, %s57
    %p59 = scmp.eq.s32.totalorder %s19, 0
    %p60 = por %p58, %p59
    %s62 = sadd.s32 %s61, 1
    %p65 = scmp.eq.s32.totalorder %s13, 1
    %p66 = scmp.ne.s32.totalorder %s61, %s63
    %p67 = scmp.eq.s32.totalorder %s13, 0
    %p68 = por %p66, %p67
    %p69 = scmp.ne.s32.totalorder %s61, %s63
    %p70 = scmp.eq.s32.totalorder %s18, 1
    %p71 = por %p69, %p70
    %p72 = scmp.ne.s32.totalorder %s63, %s64
    %p73 = scmp.eq.s32.totalorder %s18, 0
    %p74 = por %p72, %p73
    %p75 = scmp.ne.s32.totalorder %s63, %s64
    %p76 = scmp.eq.s32.totalorder %s19, 1
    %p77 = por %p75, %p76
    %p79 = scmp.ne.s32.totalorder %s64, %s78
    %p80 = scmp.eq.s32.totalorder %s19, 0
    %p81 = por %p79, %p80
    %s83 = sadd.s32 %s82, 1
    %p86 = scmp.eq.s32.totalorder %s13, 1
    %p87 = scmp.ne.s32.totalorder %s82, %s84
    %p88 = scmp.eq.s32.totalorder %s13, 0
    %p89 = por %p87, %p88
    %p90 = scmp.ne.s32.totalorder %s82, %s84
    %p91 = scmp.eq.s32.totalorder %s18, 1
    %p92 = por %p90, %p91
    %p93 = scmp.ne.s32.totalorder %s84, %s85
    %p94 = scmp.eq.s32.totalorder %s18, 0
    %p95 = por %p93, %p94
    %p96 = scmp.ne.s32.totalorder %s84, %s85
    %p97 = scmp.eq.s32.totalorder %s19, 1
    %p98 = por %p96, %p97
    %p100 = scmp.ne.s32.totalorder %s85, %s99
    %p101 = scmp.eq.s32.totalorder %s19, 0
    %p102 = por %p100, %p101
    %s104 = sadd.s32 %s103, 1
    %p107 = scmp.eq.s32.totalorder %s13, 1
    %p108 = scmp.ne.s32.totalorder %s103, %s105
    %p109 = scmp.eq.s32.totalorder %s13, 0
    %p110 = por %p108, %p109
    %p111 = scmp.ne.s32.totalorder %s103, %s105
    %p112 = scmp.eq.s32.totalorder %s18, 1
    %p113 = por %p111, %p112
    %p114 = scmp.ne.s32.totalorder %s105, %s106
    %p115 = scmp.eq.s32.totalorder %s18, 0
    %p116 = por %p114, %p115
    %p117 = scmp.ne.s32.totalorder %s105, %s106
    %p118 = scmp.eq.s32.totalorder %s19, 1
    %p119 = por %p117, %p118
    %p121 = scmp.ne.s32.totalorder %s106, %s120
    %p122 = scmp.eq.s32.totalorder %s19, 0
    %p123 = por %p121, %p122
    %s125 = sadd.s32 %s124, 1
    %p128 = scmp.eq.s32.totalorder %s13, 1
    %p129 = scmp.ne.s32.totalorder %s124, %s126
    %p130 = scmp.eq.s32.totalorder %s13, 0
    %p131 = por %p129, %p130
    %p132 = scmp.ne.s32.totalorder %s124, %s126
    %p133 = scmp.eq.s32.totalorder %s18, 1
    %p134 = por %p132, %p133
    %p135 = scmp.ne.s32.totalorder %s126, %s127
    %p136 = scmp.eq.s32.totalorder %s18, 0
    %p137 = por %p135, %p136
    %p138 = scmp.ne.s32.totalorder %s126, %s127
    %p139 = scmp.eq.s32.totalorder %s19, 1
    %p140 = por %p138, %p139
    %p142 = scmp.ne.s32.totalorder %s127, %s141
    %p143 = scmp.eq.s32.totalorder %s19, 0
    %p144 = por %p142, %p143
    %s145 = ssub.s32 %s20, %s32
    %s146 = ssub.s32 %s21, %s28
    %s147 = sor.u32 %s145, %s146
    %p148 = scmp.eq.s32.totalorder %s147, 0
    %s150 = sadd.s32 %s149, 1
    %s151 = scalar_select %p148, %s149, %s150
    %p154 = pneg %p148
    %p155 = scmp.eq.s32.totalorder %s13, 1
    %p156 = por %p154, %p155
    %p157 = scmp.ne.s32.totalorder %s149, %s152
    %p158 = scmp.eq.s32.totalorder %s13, 0
    %p159 = por %p157, %p158
    %p160 = scmp.ne.s32.totalorder %s149, %s152
    %p161 = scmp.eq.s32.totalorder %s18, 1
    %p162 = por %p160, %p161
    %p163 = scmp.ne.s32.totalorder %s152, %s153
    %p164 = scmp.eq.s32.totalorder %s18, 0
    %p165 = por %p163, %p164
    %p166 = scmp.ne.s32.totalorder %s152, %s153
    %p167 = scmp.eq.s32.totalorder %s19, 1
    %p168 = por %p166, %p167
    %p170 = scmp.ne.s32.totalorder %s153, %s169
    %p171 = scmp.eq.s32.totalorder %s19, 0
    %p172 = por %p170, %p171
    %s173 = ssub.s32 %s20, %s32
    %p174 = scmp.eq.s32.totalorder %s173, 0
    %s176 = sadd.s32 %s175, 1
    %s177 = scalar_select %p174, %s175, %s176
    %p180 = pneg %p174
    %p181 = scmp.eq.s32.totalorder %s13, 1
    %p182 = por %p180, %p181
    %p183 = scmp.ne.s32.totalorder %s175, %s178
    %p184 = scmp.eq.s32.totalorder %s13, 0
    %p185 = por %p183, %p184
    %p186 = scmp.ne.s32.totalorder %s175, %s178
    %p187 = scmp.eq.s32.totalorder %s18, 1
    %p188 = por %p186, %p187
    %p189 = scmp.ne.s32.totalorder %s178, %s179
    %p190 = scmp.eq.s32.totalorder %s18, 0
    %p191 = por %p189, %p190
    %p192 = scmp.ne.s32.totalorder %s178, %s179
    %p193 = scmp.eq.s32.totalorder %s19, 1
    %p194 = por %p192, %p193
    %p196 = scmp.ne.s32.totalorder %s179, %s195
    %p197 = scmp.eq.s32.totalorder %s19, 0
    %p198 = por %p196, %p197
    %p199 = scmp.le.s32.totalorder 1, %s13
    %p200 = scmp.lt.s32.totalorder %s13, 3
    %p201 = pnand %p199, %p200
    %p202 = pneg %p201
    // Predicated region
    $region9: #{_lambda_.2} parent=5 // pred_check
      _
    $region10: #{_lambda_.2} parent=5 // pred_check_branch
      %204 = sbr.rel (%p201) target = $region12
    $region11: #{_lambda_.2} parent=5 // pred_region
      %s205 = ssub.s32 %s13, 1
      // Predicated region
      $region13: #{_lambda_.2} parent=11 // pred_check
        %p206 = pneg %p74
      $region14: #{_lambda_.2} parent=11 // pred_check_branch
        %208 = sbr.rel (%p206) target = $region16
      $region15: #{_lambda_.2} parent=11 // pred_region
        _
      $region16: #{_lambda_.2} parent=11 // pred_fallthru
        _
      // Predicated region
      $region17: #{_lambda_.2} parent=11 // pred_check
        %p209 = pneg %p95
      $region18: #{_lambda_.2} parent=11 // pred_check_branch
        %211 = sbr.rel (%p209) target = $region20
      $region19: #{_lambda_.2} parent=11 // pred_region
        _
      $region20: #{_lambda_.2} parent=11 // pred_fallthru
        _
      // Predicated region
      $region21: #{_lambda_.2} parent=11 // pred_check
        %p212 = pneg %p116
      $region22: #{_lambda_.2} parent=11 // pred_check_branch
        %214 = sbr.rel (%p212) target = $region24
      $region23: #{_lambda_.2} parent=11 // pred_region
        _
      $region24: #{_lambda_.2} parent=11 // pred_fallthru
        _
      // Predicated region
      $region25: #{_lambda_.2} parent=11 // pred_check
        %p215 = pneg %p137
      $region26: #{_lambda_.2} parent=11 // pred_check_branch
        %217 = sbr.rel (%p215) target = $region28
      $region27: #{_lambda_.2} parent=11 // pred_region
        _
      $region28: #{_lambda_.2} parent=11 // pred_fallthru
        _
    $region12: #{_lambda_.2} parent=5 // pred_fallthru
      _
    %p218 = scmp.lt.s32.totalorder %s13, 2
    // Predicated region
    $region29: #{_lambda_.2} parent=5 // pred_check
      %p219 = pneg %p218
    $region30: #{_lambda_.2} parent=5 // pred_check_branch
      %221 = sbr.rel (%p219) target = $region32
    $region31: #{_lambda_.2} parent=5 // pred_region
      // Predicated region
      $region33: #{_lambda_.2} parent=31 // pred_check
        %p222 = pneg %p47
      $region34: #{_lambda_.2} parent=31 // pred_check_branch
        %224 = sbr.rel (%p222) target = $region36
      $region35: #{_lambda_.2} parent=31 // pred_region
        %s225 = smul.u32 2, %s21
        %p226 = scmp.lt.s32.totalorder %s20, 1
        %s227 = scalar_select %p226, %s20, 1
        %p228 = scmp.lt.s32.totalorder %s225, 1
        %s229 = scalar_select %p228, %s225, 1
        %s230 = smul.addr %s227, 2
        %s231 = sadd.s32 %s229, %s230
        %s232 = smul.addr %s231, 8
        %s233 = scalar_lea.vmem %s0, %s232
        %s234 = smul.u32 2, %s21
      $region36: #{_lambda_.2} parent=31 // pred_fallthru
        _
    $region32: #{_lambda_.2} parent=5 // pred_fallthru
      _
    %p235 = scmp.le.s32.totalorder 1, %s13
    %p236 = scmp.lt.s32.totalorder %s13, 3
    %p237 = pnand %p235, %p236
    %p238 = pneg %p237
    // Predicated region
    $region37: #{_lambda_.2} parent=5 // pred_check
      _
    $region38: #{_lambda_.2} parent=5 // pred_check_branch
      %240 = sbr.rel (%p237) target = $region40
    $region39: #{_lambda_.2} parent=5 // pred_region
      %s241 = ssub.s32 %s13, 1
      %s242 = smul.u32 2, %s23
      %p243 = scmp.lt.s32.totalorder %s22, 1
      %s244 = scalar_select %p243, %s22, 1
      %p245 = scmp.lt.s32.totalorder %s242, 1
      %s246 = scalar_select %p245, %s242, 1
      %s247 = smul.addr %s244, 2
      %s248 = sadd.s32 %s246, %s247
      %s249 = smul.addr %s248, 8
      %s250 = scalar_lea.vmem %s0, %s249
      %p251 = pneg %p53
      %p252 = pneg %p50
      %p253 = pneg %p74
      %p254 = pneg %p71
      %p255 = pneg %p95
      %p256 = pneg %p92
      %p257 = pneg %p116
      %p258 = pneg %p113
      %p259 = pneg %p137
      %p260 = pneg %p134
      %p261 = pneg %p165
      %p262 = pneg %p162
      %s263 = smul.u32 2, %s23
      %p264 = scmp.lt.s32.totalorder %s22, 1
      %s265 = scalar_select %p264, %s22, 1
      %p266 = scmp.lt.s32.totalorder %s263, 1
      %s267 = scalar_select %p266, %s263, 1
      %s268 = smul.addr %s265, 2
      %s269 = sadd.s32 %s267, %s268
      %s270 = smul.addr %s269, 8
      %s271 = scalar_lea.vmem %s5, %s270
      %p272 = pneg %p191
      %p273 = pneg %p188
      %p274 = scmp.lt.s32.totalorder %s22, 1
      %s275 = scalar_select %p274, %s22, 1
      %s276 = scalar_lea.vmem %s6, %s275
      %s277 = smul.u32 2, %s23
      %p278 = scmp.lt.s32.totalorder %s22, 1
      %s279 = scalar_select %p278, %s22, 1
      %p280 = scmp.lt.s32.totalorder %s277, 1
      %s281 = scalar_select %p280, %s277, 1
      %s282 = smul.addr %s279, 2
      %s283 = sadd.s32 %s281, %s282
      %s284 = smul.addr %s283, 8
      %s285 = scalar_lea.vmem %s0, %s284
      %s286 = smul.u32 2, %s23
      %s287 = smul.u32 2, %s23
      %p288 = scmp.lt.s32.totalorder %s22, 1
      %s289 = scalar_select %p288, %s22, 1
      %p290 = scmp.lt.s32.totalorder %s287, 1
      %s291 = scalar_select %p290, %s287, 1
      %s292 = smul.addr %s289, 2
      %s293 = sadd.s32 %s291, %s292
      %s294 = smul.addr %s293, 8
      %s295 = scalar_lea.vmem %s5, %s294
      %s296 = smul.u32 2, %s23
      %p297 = scmp.lt.s32.totalorder %s22, 1
      %s298 = scalar_select %p297, %s22, 1
      %s299 = scalar_lea.vmem %s6, %s298
      %v301 = vld [vmem:[%s285] sm:$0xff]
      %v302 = vld [vmem:[%s285 + $0x8] sm:$0xff]
      %v303 = vpack.c.bf16 %v302, %v301
      %v304 = vld [vmem:[%s1] sm:$0xf]
      %v305 = vld [vmem:[%s2] sm:$0x1]
      %v307 = vlaneseq
      %v308 = vshrl.u32 %v307, 7
      %v309 = vsub.s32 0, %v308
      %v310 = vrot.slane %v305, %v309
      %vm312 = vcmask 64512
      %v314 = vsel %vm312, %v303, 0
      %vm316 = vcmask 1043456
      %v318 = vsel %vm316, %v304, 0
      %320 = vmatprep.subr.bf16.mxu0 0
      %321 = vmatpush1.bf16.msra.mxu0 0
      %322 = vmatprep.subr.bf16.mxu0 0
      %323 = vmatpush1.bf16.msra.mxu0 0
      %324 = vmatprep.subr.bf16.mxu0 0
      %325 = vmatpush1.bf16.msra.mxu0 0
      %326 = vmatprep.subr.bf16.mxu0 0
      %327 = vmatpush1.bf16.msra.mxu0 0
      %328 = vmatprep.subr.bf16.mxu0 0
      %329 = vmatpush1.bf16.msra.mxu0 0
      %330 = vmatprep.subr.bf16.mxu0 0
      %331 = vmatpush1.bf16.msra.mxu0 0
      %332 = vmatprep.subr.bf16.mxu0 0
      %333 = vmatpush1.bf16.msra.mxu0 0
      %334 = vmatprep.subr.bf16.mxu0 0
      %335 = vmatpush1.bf16.msra.mxu0 %v318
      %336 = vmatprep.subr.bf16.mxu0 0
      %337 = vmatpush2.bf16.msra.mxu0 0
      %338 = vmatprep.subr.bf16.mxu0 0
      %339 = vmatpush2.bf16.msra.mxu0 0
      %340 = vmatprep.subr.bf16.mxu0 0
      %341 = vmatpush2.bf16.msra.mxu0 0
      %342 = vmatprep.subr.bf16.mxu0 0
      %343 = vmatpush2.bf16.msra.mxu0 0
      %344 = vmatprep.subr.bf16.mxu0 0
      %345 = vmatpush2.bf16.msra.mxu0 0
      %346 = vmatprep.subr.bf16.mxu0 0
      %347 = vmatpush2.bf16.msra.mxu0 0
      %348 = vmatprep.subr.bf16.mxu0 0
      %349 = vmatpush2.bf16.msra.mxu0 0
      %350 = vmatprep.subr.bf16.mxu0 0
      %351 = vmatpush2.bf16.msra.mxu0 0
      %352 = vmatprep.mubr.bf16.mxu0 0
      %353 = vmatmul.mubr.bf16.gmra.mxu0 %v314
      %v354 = vpop.f32.mrf.mxu0
      %v355 = vadd.f32 %v310, %v354
      %v356 = vpop.f32.mrf.mxu0
      %v357 = vpop.f32.mrf.mxu0
      %v358 = vadd.f32 %v310, %v357
      %v359 = vpop.f32.mrf.mxu0
      %360 = vdwg.mxu0
      %p361 = scmp.eq.s32.totalorder %s23, 0
      // Predicated region
      $region41: #{_lambda_.2} parent=39 // pred_check
        %p362 = pneg %p361
      $region42: #{_lambda_.2} parent=39 // pred_check_branch
        %364 = sbr.rel (%p362) target = $region44
      $region43: #{_lambda_.2} parent=39 // pred_region
        %vm365 = vcmask 253952
        %366 = vst.msk [vmem:[%s299] sm:$0x1] %vm365, 0.0
      $region44: #{_lambda_.2} parent=39 // pred_fallthru
        _
      %v367 = vld [vmem:[%s299] sm:$0x1]
      %vm368 = vcmask 261120
      %v369 = vsel %vm368, %v355, 0.0
      %v370 = vsel %vm368, %v358, 0.0
      %v371 = vadd.f32 %v369, %v370
      %v372 = vrot.slane %v371, 4
      %v373 = vadd.f32 %v371, %v372
      %v374 = vrot.slane %v373, 2
      %v375 = vadd.f32 %v373, %v374
      %v376 = vrot.slane %v375, 1
      %v377 = vadd.f32 %v375, %v376
      %v378 = vadd.f32 %v367, %v377
      %vm379 = vcmask 253952
      %380 = vst.msk [vmem:[%s299] sm:$0x1] %vm379, %v378
      %v381 = vld [vmem:[%s3] sm:$0xf]
      %v382 = vld [vmem:[%s3 + $0x4] sm:$0xf]
      %v383 = vld [vmem:[%s3 + $0x8] sm:$0xf]
      %v384 = vld [vmem:[%s3 + $0xc] sm:$0xf]
      %v385 = vld [vmem:[%s3 + $0x10] sm:$0xf]
      %v386 = vld [vmem:[%s3 + $0x14] sm:$0xf]
      %v387 = vld [vmem:[%s3 + $0x18] sm:$0xf]
      %v388 = vld [vmem:[%s3 + $0x1c] sm:$0xf]
      %v389 = vpack.c.bf16 %v358, %v355
      %v398 = vunpack.c.l.b16 %v381
      %v399 = vunpack.c.l.b16 %v382
      %v400 = vunpack.c.l.b16 %v383
      %v401 = vunpack.c.l.b16 %v384
      %v402 = vunpack.c.l.b16 %v385
      %v403 = vunpack.c.l.b16 %v386
      %v404 = vunpack.c.l.b16 %v387
      %v405 = vunpack.c.l.b16 %v388
      %v406 = vpack.c.b16 %v399, %v398
      %v407 = vpack.c.b16 %v401, %v400
      %v408 = vpack.c.b16 %v403, %v402
      %v409 = vpack.c.b16 %v405, %v404
      %v411 = vsel %vm368, %v389, 0
      %v414 = vsel %vm368, %v406, 0
      %v417 = vsel %vm368, %v407, 0
      %v420 = vsel %vm368, %v408, 0
      %v423 = vsel %vm368, %v409, 0
      %425 = vmatprep.subr.bf16.mxu0 0
      %426 = vmatpush1.bf16.xpose.msra.mxu0 0
      %427 = vmatprep.subr.bf16.mxu0 0
      %428 = vmatpush1.bf16.xpose.msra.mxu0 0
      %429 = vmatprep.subr.bf16.mxu0 0
      %430 = vmatpush1.bf16.xpose.msra.mxu0 0
      %431 = vmatprep.subr.bf16.mxu0 0
      %432 = vmatpush1.bf16.xpose.msra.mxu0 0
      %433 = vmatprep.subr.bf16.mxu0 0
      %434 = vmatpush1.bf16.xpose.msra.mxu0 %v423
      %435 = vmatprep.subr.bf16.mxu0 0
      %436 = vmatpush1.bf16.xpose.msra.mxu0 %v420
      %437 = vmatprep.subr.bf16.mxu0 0
      %438 = vmatpush1.bf16.xpose.msra.mxu0 %v417
      %439 = vmatprep.subr.bf16.mxu0 0
      %440 = vmatpush1.bf16.xpose.msra.mxu0 %v414
      %441 = vmatprep.subr.bf16.mxu0 0
      %442 = vmatpush2.bf16.xpose.msra.mxu0 0
      %443 = vmatprep.subr.bf16.mxu0 0
      %444 = vmatpush2.bf16.xpose.msra.mxu0 0
      %445 = vmatprep.subr.bf16.mxu0 0
      %446 = vmatpush2.bf16.xpose.msra.mxu0 0
      %447 = vmatprep.subr.bf16.mxu0 0
      %448 = vmatpush2.bf16.xpose.msra.mxu0 0
      %449 = vmatprep.subr.bf16.mxu0 0
      %450 = vmatpush2.bf16.xpose.msra.mxu0 0
      %451 = vmatprep.subr.bf16.mxu0 0
      %452 = vmatpush2.bf16.xpose.msra.mxu0 0
      %453 = vmatprep.subr.bf16.mxu0 0
      %454 = vmatpush2.bf16.xpose.msra.mxu0 0
      %455 = vmatprep.subr.bf16.mxu0 0
      %456 = vmatpush2.bf16.xpose.msra.mxu0 0
      %457 = vmatprep.mubr.bf16.mxu0 0
      %458 = vmatmul.mubr.bf16.gmra.mxu0 %v411
      %v459 = vpop.f32.mrf.mxu0
      %v460 = vadd.f32 0.0, %v459
      %v461 = vpop.f32.mrf.mxu0
      %v462 = vpop.f32.mrf.mxu0
      %v463 = vadd.f32 0.0, %v462
      %v464 = vpop.f32.mrf.mxu0
      %465 = vdwg.mxu0
      %v466 = vmul.f32 %v460, -2.0
      %v467 = vmul.f32 %v463, -2.0
      %v468 = vld [vmem:[%s4] sm:$0x1]
      %v470 = vlaneseq
      %v471 = vshrl.u32 %v470, 7
      %v472 = vsub.s32 0, %v471
      %v473 = vrot.slane %v468, %v472
      %v475 = vadd.f32 %v466, %v473
      %v476 = vadd.f32 %v467, %v473
      %v477 = vlaneseq
      %v478 = vand.u32 %v477, 127
      %vm479 = vcmask 523264
      %v480 = vsel %vm479, %v475, inf
      %481 = vmin.xlane.f32.xlu0 %v480
      %v482 = vpop.xlane.xlu0 %481
      %v483 = vsel %vm479, %v476, inf
      %484 = vmin.xlane.f32.xlu0 %v483
      %v485 = vpop.xlane.xlu0 %484
      %vm486 = vcmp.eq.f32.partialorder %v475, %v482
      %vm487 = vcmp.eq.f32.partialorder %v476, %v485
      %v488 = vsel %vm486, %v478, 64
      %v489 = vsel %vm487, %v478, 64
      %v490 = vsel %vm479, %v488, 2147483647
      %v491 = vand.u32 %v490, 65535
      %v492 = vshra.s32 %v490, 16
      %v493 = vcvt.s32.f32 %v491
      %v494 = vcvt.s32.f32 %v492
      %495 = vmin.xlane.f32.xlu0 %v494
      %v496 = vpop.xlane.xlu0 %495
      %vm497 = vcmp.eq.f32.partialorder %v494, %v496
      %v498 = vsel %vm497, %v493, inf
      %499 = vmin.xlane.f32.xlu0 %v498
      %v500 = vpop.xlane.xlu0 %499
      %v501 = vcvt.f32.s32 %v500
      %v502 = vcvt.f32.s32 %v496
      %v503 = vshll.u32 %v502, 16
      %v504 = vadd.s32 %v503, %v501
      %v505 = vsel %vm479, %v489, 2147483647
      %v506 = vand.u32 %v505, 65535
      %v507 = vshra.s32 %v505, 16
      %v508 = vcvt.s32.f32 %v506
      %v509 = vcvt.s32.f32 %v507
      %510 = vmin.xlane.f32.xlu0 %v509
      %v511 = vpop.xlane.xlu0 %510
      %vm512 = vcmp.eq.f32.partialorder %v509, %v511
      %v513 = vsel %vm512, %v508, inf
      %514 = vmin.xlane.f32.xlu0 %v513
      %v515 = vpop.xlane.xlu0 %514
      %v516 = vcvt.f32.s32 %v515
      %v517 = vcvt.f32.s32 %v511
      %v518 = vshll.u32 %v517, 16
      %v519 = vadd.s32 %v518, %v516
      %vm520 = vcmask 7168
      %521 = vst.msk [vmem:[%s295] sm:$0xff] %vm520, %v504
      %522 = vst.msk [vmem:[%s295 + $0x8] sm:$0xff] %vm520, %v519
      %s523 = smul.u32 2, %s23
      %p524 = scmp.lt.s32.totalorder %s22, 1
      %s525 = scalar_select %p524, %s22, 1
      %p526 = scmp.lt.s32.totalorder %s523, 1
      %s527 = scalar_select %p526, %s523, 1
      %s528 = smul.addr %s525, 2
      %s529 = sadd.s32 %s527, %s528
      %s530 = smul.addr %s529, 8
      %s531 = scalar_lea.vmem %s5, %s530
      %p532 = scmp.lt.s32.totalorder %s22, 1
      %s533 = scalar_select %p532, %s22, 1
      %s534 = scalar_lea.vmem %s6, %s533
      // Predicated region
      $region45: #{_lambda_.2} parent=39 // pred_check
        %p535 = pneg %p162
      $region46: #{_lambda_.2} parent=39 // pred_check_branch
        %537 = sbr.rel (%p535) target = $region48
      $region47: #{_lambda_.2} parent=39 // pred_region
        %s538 = smul.u32 2, %s23
      $region48: #{_lambda_.2} parent=39 // pred_fallthru
        _
      // Predicated region
      $region49: #{_lambda_.2} parent=39 // pred_check
        %p539 = pneg %p188
      $region50: #{_lambda_.2} parent=39 // pred_check_branch
        %541 = sbr.rel (%p539) target = $region52
      $region51: #{_lambda_.2} parent=39 // pred_region
        _
      $region52: #{_lambda_.2} parent=39 // pred_fallthru
        _
    $region40: #{_lambda_.2} parent=5 // pred_fallthru
      _
    %p542 = scmp.le.s32.totalorder 2, %s13
    // Predicated region
    $region53: #{_lambda_.2} parent=5 // pred_check
      %p543 = pneg %p542
    $region54: #{_lambda_.2} parent=5 // pred_check_branch
      %545 = sbr.rel (%p543) target = $region56
    $region55: #{_lambda_.2} parent=5 // pred_region
      %s546 = ssub.s32 %s13, 2
      // Predicated region
      $region57: #{_lambda_.2} parent=55 // pred_check
        %p547 = pneg %p168
      $region58: #{_lambda_.2} parent=55 // pred_check_branch
        %549 = sbr.rel (%p547) target = $region60
      $region59: #{_lambda_.2} parent=55 // pred_region
        %s550 = smul.u32 2, %s25
        %p551 = scmp.lt.s32.totalorder %s24, 1
        %s552 = scalar_select %p551, %s24, 1
        %p553 = scmp.lt.s32.totalorder %s550, 1
        %s554 = scalar_select %p553, %s550, 1
        %s555 = smul.addr %s552, 2
        %s556 = sadd.s32 %s554, %s555
        %s557 = smul.addr %s556, 8
        %s558 = scalar_lea.vmem %s5, %s557
      $region60: #{_lambda_.2} parent=55 // pred_fallthru
        _
      // Predicated region
      $region61: #{_lambda_.2} parent=55 // pred_check
        %p559 = pneg %p194
      $region62: #{_lambda_.2} parent=55 // pred_check_branch
        %561 = sbr.rel (%p559) target = $region64
      $region63: #{_lambda_.2} parent=55 // pred_region
        %p562 = scmp.lt.s32.totalorder %s24, 1
        %s563 = scalar_select %p562, %s24, 1
        %s564 = scalar_lea.vmem %s6, %s563
      $region64: #{_lambda_.2} parent=55 // pred_fallthru
        _
    $region56: #{_lambda_.2} parent=5 // pred_fallthru
      _
  $region6: #{_lambda_.2} parent=0 // loop_footer
    %s17 = sadd.s32 1, %s13
  $region7: #{_lambda_.2} parent=0 // loop_footer_branch
    %12 = sbr.rel target = $region3
  $region8: #{_lambda_.2} parent=0 // loop_exit
    _

</llo_original>
